<compile_context>
chip_gen: v6e
topology: v6e:2x2x1
jax: 0.10.0
libtpu: 0.0.40
codegen_flags: <defaults>
</compile_context>

<pallas_src>
import functools

import jax
import jax.numpy as jnp
from jax import lax
from jax.experimental import pallas as pl
from jax.experimental.pallas import tpu as pltpu


def crp_kernel(w_ref, x_ref, o_ref, padw_ref, padh_ref, *, n_stages, H, W, C):
    """One pair of packed images per grid step.

    w_ref:    (n_stages, 2*W*C, 2*W*C) VMEM -- block-diag packed 1x1 weights
    x_ref:    (1, H, 2*W*C)            VMEM -- packed input  [img0 | img1] lanes
    o_ref:    (1, H, 2*W*C)            VMEM -- packed output
    padw_ref: (2, H, (W+4)*C)          VMEM -- per-image -inf padded scratch (W dir)
    padh_ref: (H+4, 2*W*C)             VMEM -- -inf padded scratch (H dir)
    """
    WC = W * C
    P = 2 * WC
    dt = x_ref.dtype  # NOTE: float activations assumed (maxpool pad = -inf)

    # Write only the -inf borders; the interiors are fully overwritten every
    # stage, so nothing stale can leak between stages or grid steps.
    for g in range(2):
        padw_ref[g, :, 0:2 * C] = jnp.full((H, 2 * C), -jnp.inf, dt)
        padw_ref[g, :, (W + 2) * C:(W + 4) * C] = jnp.full((H, 2 * C), -jnp.inf, dt)
    padh_ref[0:2, :] = jnp.full((2, P), -jnp.inf, dt)
    padh_ref[H + 2:H + 4, :] = jnp.full((2, P), -jnp.inf, dt)

    x = x_ref[0]                        # (H, 2*W*C)
    acc = x.astype(jnp.float32)         # residual accumulator, f32
    top = x                             # pooling input for the current stage

    for s in range(n_stages):
        # ---- separable 5x5 max-pool, stride 1, pad 2 ----
        # W direction: shift of dx columns == dx*C lanes.  Each packed image
        # gets its own -inf-bordered scratch slab so taps never cross the
        # image boundary at lane W*C.
        # TODO(synk): for scaled-up feature maps replace the scratch round trip
        # with pltpu.roll (XLU) + iota boundary masks to off-load the vld slot.
        for g in range(2):
            padw_ref[g, :, 2 * C:(W + 2) * C] = top[:, g * WC:(g + 1) * WC]
        for g in range(2):
            pooled_g = padw_ref[g, :, 0:WC]
            for k in range(1, 5):
                pooled_g = jnp.maximum(pooled_g, padw_ref[g, :, k * C:k * C + WC])
            # Stage the W-pooled result straight into the H-direction scratch.
            padh_ref[2:H + 2, g * WC:(g + 1) * WC] = pooled_g

        # H direction (sublane axis): 5 static row slices of the -inf padded
        # buffer, full 128-lane rows.
        pooled = padh_ref[0:H, :]
        for k in range(1, 5):
            pooled = jnp.maximum(pooled, padh_ref[k:k + H, :])

        # ---- 1x1 conv: block-diagonal packed weight on the MXU ----
        # TODO(synk): for realistic channel counts (C >= 128) drop the kron and
        # do a dense channel-lane (N*H*W, C)@(C, C) matmul (optionally bf16-fed)
        # instead; the kron layout is only cheap at C = 4.
        conv = jnp.dot(pooled, w_ref[s], preferred_element_type=jnp.float32)
        acc = acc + conv                # fused residual, stays in f32
        top = conv.astype(dt)           # input to the next stage's pooling

    o_ref[0] = acc.astype(o_ref.dtype)


def crp_block(x_nchw, weights):
    """weights: list of (Cout, Cin) arrays (one per stage), Cout == Cin == C."""
    n_stages = len(weights)
    N, C, H, W = x_nchw.shape
    WC = W * C
    P = 2 * WC

    # Pack two images per row so the lane axis is 2*W*C (= 128 for C=4, W=16).
    G = -(-N // 2)            # ceil(N / 2) pair-groups
    Npad = 2 * G
    x = x_nchw
    if Npad != N:             # pad odd batches with zeros (results discarded)
        x = jnp.concatenate([x, jnp.zeros((Npad - N, C, H, W), x.dtype)], axis=0)

    # NCHW -> NHWC -> (Npad, H, W*C) -> pair images on lanes -> (G, H, 2*W*C).
    x = jnp.transpose(x, (0, 2, 3, 1)).reshape(Npad, H, WC)
    x = x.reshape(G, 2, H, WC).transpose(0, 2, 1, 3).reshape(G, H, P)

    # Block-diagonal packed weights: kron(I_{2W}, w^T) so that
    #   out[h, g*C + co] = sum_ci in[h, g*C + ci] * weight[co, ci]
    # for every packed column group g in [0, 2W).
    eye = jnp.eye(2 * W, dtype=x.dtype)
    w_bd = jnp.stack(
        [jnp.kron(eye, jnp.transpose(wt).astype(x.dtype)) for wt in weights],
        axis=0)                                            # (S, P, P)

    kernel = functools.partial(crp_kernel, n_stages=n_stages, H=H, W=W, C=C)
    out = pl.pallas_call(
        kernel,
        out_shape=jax.ShapeDtypeStruct((G, H, P), x.dtype),
        grid_spec=pltpu.PrefetchScalarGridSpec(
            num_scalar_prefetch=0,
            grid=(G,),
            in_specs=[
                pl.BlockSpec((n_stages, P, P), lambda g: (0, 0, 0)),  # weights
                pl.BlockSpec((1, H, P), lambda g: (g, 0, 0)),         # x (packed)
            ],
            out_specs=pl.BlockSpec((1, H, P), lambda g: (g, 0, 0)),
            scratch_shapes=[
                pltpu.VMEM((2, H, (W + 4) * C), x.dtype),   # per-image W-pad
                pltpu.VMEM((H + 4, P), x.dtype),            # H-pad
            ],
        ),
        input_output_aliases={1: 0},   # output reuses the packed x HBM buffer
        compiler_params=pltpu.CompilerParams(dimension_semantics=("parallel",)),
    )(w_bd, x)

    # (G, H, 2*W*C) -> (Npad, H, W, C) -> NCHW, drop batch padding.
    out = out.reshape(G, H, 2, W, C).transpose(0, 2, 1, 3, 4)
    out = out.reshape(Npad, H, W, C)
    return jnp.transpose(out, (0, 3, 1, 2))[:N]


def crp_ref(x_nchw, weights):
    """Pure-JAX reference (NCHW, matches the PyTorch module)."""
    x = x_nchw
    top = x
    for wt in weights:
        top = lax.reduce_window(top, -jnp.inf, lax.max,
                                (1, 1, 5, 5), (1, 1, 1, 1),
                                [(0, 0), (0, 0), (2, 2), (2, 2)])
        top = jnp.einsum('oi,nihw->nohw', wt, top)   # conv1x1, no bias
        x = top + x
    return x


if __name__ == "__main__":
    key = jax.random.PRNGKey(0)
    N, C, H, W = 2, 4, 16, 16     # in_planes == out_planes == 4
    n_stages = 2

    kx, *kws = jax.random.split(key, 1 + n_stages)
    x = jax.random.normal(kx, (N, C, H, W), dtype=jnp.float32)
    # Deterministic synthetic conv1x1 weights, PyTorch layout (Cout, Cin) squeezed.
    weights = [jax.random.normal(k, (C, C), dtype=jnp.float32) * 0.1 for k in kws]

    out = jax.block_until_ready(jax.jit(crp_block)(x, weights))
    ref = jax.block_until_ready(crp_ref(x, weights))

    assert out.shape == (N, C, H, W)
    assert jnp.allclose(out, ref, atol=1e-5, rtol=1e-5), "mismatch vs reference"
    print("KERNEL_OK")
</pallas_src>

<mosaic_0001>
module attributes {stable_mosaic.version = 11 : i64} {
  func.func @crp_kernel(%arg0: i32, %arg1: memref<2x128x128xf32, #tpu.memory_space<vmem>>, %arg2: memref<1x16x128xf32, #tpu.memory_space<vmem>>, %arg3: memref<1x16x128xf32, #tpu.memory_space<vmem>>, %arg4: memref<2x16x80xf32, #tpu.memory_space<vmem>>, %arg5: memref<20x128xf32, #tpu.memory_space<vmem>>) attributes {dimension_semantics = [#tpu.dimension_semantics<parallel>], iteration_bounds = array<i64: 1>, scalar_prefetch = 0 : i64, scratch_operands = 2 : i64, tpu.core_type = #tpu.core_type<tc>, window_params = [{pipeline_mode = #tpu.pipeline_mode<synchronous>, transform_indices = @transform_0, window_bounds = array<i64: 2, 128, 128>}, {transform_indices = @transform_1, window_bounds = array<i64: 1, 16, 128>}, {transform_indices = @transform_2, window_bounds = array<i64: 1, 16, 128>}]} {
    %cst = arith.constant 0xFF800000 : f32
    %0 = vector.broadcast %cst : f32 to vector<16x8xf32>
    %c0 = arith.constant 0 : index
    %c0_0 = arith.constant 0 : index
    %c0_1 = arith.constant 0 : index
    %1 = vector.load %arg4[%c0, %c0_0, %c0_1] : memref<2x16x80xf32, #tpu.memory_space<vmem>>, vector<1x16x8xf32>
    %2 = vector.shape_cast %1 : vector<1x16x8xf32> to vector<16x8xf32>
    %3 = vector.shape_cast %0 : vector<16x8xf32> to vector<1x16x8xf32>
    tpu.vector_store %arg4[%c0, %c0_0, %c0_1], %3 {strides = array<i32>} : memref<2x16x80xf32, #tpu.memory_space<vmem>>, vector<1x16x8xf32>,
    %cst_2 = arith.constant 0xFF800000 : f32
    %4 = vector.broadcast %cst_2 : f32 to vector<16x8xf32>
    %c0_3 = arith.constant 0 : index
    %c0_4 = arith.constant 0 : index
    %c72 = arith.constant 72 : index
    %5 = vector.load %arg4[%c0_3, %c0_4, %c72] : memref<2x16x80xf32, #tpu.memory_space<vmem>>, vector<1x16x8xf32>
    %6 = vector.shape_cast %5 : vector<1x16x8xf32> to vector<16x8xf32>
    %7 = vector.shape_cast %4 : vector<16x8xf32> to vector<1x16x8xf32>
    tpu.vector_store %arg4[%c0_3, %c0_4, %c72], %7 {strides = array<i32>} : memref<2x16x80xf32, #tpu.memory_space<vmem>>, vector<1x16x8xf32>,
    %cst_5 = arith.constant 0xFF800000 : f32
    %8 = vector.broadcast %cst_5 : f32 to vector<16x8xf32>
    %c1 = arith.constant 1 : index
    %c0_6 = arith.constant 0 : index
    %c0_7 = arith.constant 0 : index
    %9 = vector.load %arg4[%c1, %c0_6, %c0_7] : memref<2x16x80xf32, #tpu.memory_space<vmem>>, vector<1x16x8xf32>
    %10 = vector.shape_cast %9 : vector<1x16x8xf32> to vector<16x8xf32>
    %11 = vector.shape_cast %8 : vector<16x8xf32> to vector<1x16x8xf32>
    tpu.vector_store %arg4[%c1, %c0_6, %c0_7], %11 {strides = array<i32>} : memref<2x16x80xf32, #tpu.memory_space<vmem>>, vector<1x16x8xf32>,
    %cst_8 = arith.constant 0xFF800000 : f32
    %12 = vector.broadcast %cst_8 : f32 to vector<16x8xf32>
    %c1_9 = arith.constant 1 : index
    %c0_10 = arith.constant 0 : index
    %c72_11 = arith.constant 72 : index
    %13 = vector.load %arg4[%c1_9, %c0_10, %c72_11] : memref<2x16x80xf32, #tpu.memory_space<vmem>>, vector<1x16x8xf32>
    %14 = vector.shape_cast %13 : vector<1x16x8xf32> to vector<16x8xf32>
    %15 = vector.shape_cast %12 : vector<16x8xf32> to vector<1x16x8xf32>
    tpu.vector_store %arg4[%c1_9, %c0_10, %c72_11], %15 {strides = array<i32>} : memref<2x16x80xf32, #tpu.memory_space<vmem>>, vector<1x16x8xf32>,
    %cst_12 = arith.constant 0xFF800000 : f32
    %16 = vector.broadcast %cst_12 : f32 to vector<2x128xf32>
    %c0_13 = arith.constant 0 : index
    %c0_14 = arith.constant 0 : index
    %17 = vector.load %arg5[%c0_13, %c0_14] : memref<20x128xf32, #tpu.memory_space<vmem>>, vector<2x128xf32>
    tpu.vector_store %arg5[%c0_13, %c0_14], %16 {strides = array<i32>} : memref<20x128xf32, #tpu.memory_space<vmem>>, vector<2x128xf32>,
    %cst_15 = arith.constant 0xFF800000 : f32
    %18 = vector.broadcast %cst_15 : f32 to vector<2x128xf32>
    %c18 = arith.constant 18 : index
    %c0_16 = arith.constant 0 : index
    %19 = vector.load %arg5[%c18, %c0_16] : memref<20x128xf32, #tpu.memory_space<vmem>>, vector<2x128xf32>
    tpu.vector_store %arg5[%c18, %c0_16], %18 {strides = array<i32>} : memref<20x128xf32, #tpu.memory_space<vmem>>, vector<2x128xf32>,
    %c0_17 = arith.constant 0 : index
    %c0_18 = arith.constant 0 : index
    %c0_19 = arith.constant 0 : index
    %20 = vector.load %arg2[%c0_17, %c0_18, %c0_19] : memref<1x16x128xf32, #tpu.memory_space<vmem>>, vector<1x16x128xf32>
    %21 = vector.shape_cast %20 : vector<1x16x128xf32> to vector<16x128xf32>
    %22 = vector.extract_strided_slice %21 {offsets = [0, 0], sizes = [16, 64], strides = [1, 1]} : vector<16x128xf32> to vector<16x64xf32>
    %c0_20 = arith.constant 0 : index
    %c0_21 = arith.constant 0 : index
    %c8 = arith.constant 8 : index
    %23 = vector.load %arg4[%c0_20, %c0_21, %c8] : memref<2x16x80xf32, #tpu.memory_space<vmem>>, vector<1x16x64xf32>
    %24 = vector.shape_cast %23 : vector<1x16x64xf32> to vector<16x64xf32>
    %25 = vector.shape_cast %22 : vector<16x64xf32> to vector<1x16x64xf32>
    tpu.vector_store %arg4[%c0_20, %c0_21, %c8], %25 {strides = array<i32>} : memref<2x16x80xf32, #tpu.memory_space<vmem>>, vector<1x16x64xf32>,
    %26 = vector.extract_strided_slice %21 {offsets = [0, 64], sizes = [16, 64], strides = [1, 1]} : vector<16x128xf32> to vector<16x64xf32>
    %c1_22 = arith.constant 1 : index
    %c0_23 = arith.constant 0 : index
    %c8_24 = arith.constant 8 : index
    %27 = vector.load %arg4[%c1_22, %c0_23, %c8_24] : memref<2x16x80xf32, #tpu.memory_space<vmem>>, vector<1x16x64xf32>
    %28 = vector.shape_cast %27 : vector<1x16x64xf32> to vector<16x64xf32>
    %29 = vector.shape_cast %26 : vector<16x64xf32> to vector<1x16x64xf32>
    tpu.vector_store %arg4[%c1_22, %c0_23, %c8_24], %29 {strides = array<i32>} : memref<2x16x80xf32, #tpu.memory_space<vmem>>, vector<1x16x64xf32>,
    %c0_25 = arith.constant 0 : index
    %c0_26 = arith.constant 0 : index
    %c0_27 = arith.constant 0 : index
    %30 = vector.load %arg4[%c0_25, %c0_26, %c0_27] : memref<2x16x80xf32, #tpu.memory_space<vmem>>, vector<1x16x64xf32>
    %31 = vector.shape_cast %30 : vector<1x16x64xf32> to vector<16x64xf32>
    %c0_28 = arith.constant 0 : index
    %c0_29 = arith.constant 0 : index
    %c4 = arith.constant 4 : index
    %32 = vector.load %arg4[%c0_28, %c0_29, %c4] : memref<2x16x80xf32, #tpu.memory_space<vmem>>, vector<1x16x64xf32>
    %33 = vector.shape_cast %32 : vector<1x16x64xf32> to vector<16x64xf32>
    %34 = arith.maximumf %31, %33 : vector<16x64xf32>
    %c0_30 = arith.constant 0 : index
    %c0_31 = arith.constant 0 : index
    %c8_32 = arith.constant 8 : index
    %35 = vector.load %arg4[%c0_30, %c0_31, %c8_32] : memref<2x16x80xf32, #tpu.memory_space<vmem>>, vector<1x16x64xf32>
    %36 = vector.shape_cast %35 : vector<1x16x64xf32> to vector<16x64xf32>
    %37 = arith.maximumf %34, %36 : vector<16x64xf32>
    %c0_33 = arith.constant 0 : index
    %c0_34 = arith.constant 0 : index
    %c12 = arith.constant 12 : index
    %38 = vector.load %arg4[%c0_33, %c0_34, %c12] : memref<2x16x80xf32, #tpu.memory_space<vmem>>, vector<1x16x64xf32>
    %39 = vector.shape_cast %38 : vector<1x16x64xf32> to vector<16x64xf32>
    %40 = arith.maximumf %37, %39 : vector<16x64xf32>
    %c0_35 = arith.constant 0 : index
    %c0_36 = arith.constant 0 : index
    %c16 = arith.constant 16 : index
    %41 = vector.load %arg4[%c0_35, %c0_36, %c16] : memref<2x16x80xf32, #tpu.memory_space<vmem>>, vector<1x16x64xf32>
    %42 = vector.shape_cast %41 : vector<1x16x64xf32> to vector<16x64xf32>
    %43 = arith.maximumf %40, %42 : vector<16x64xf32>
    %c2 = arith.constant 2 : index
    %c0_37 = arith.constant 0 : index
    %44 = vector.load %arg5[%c2, %c0_37] : memref<20x128xf32, #tpu.memory_space<vmem>>, vector<16x64xf32>
    tpu.vector_store %arg5[%c2, %c0_37], %43 {strides = array<i32>} : memref<20x128xf32, #tpu.memory_space<vmem>>, vector<16x64xf32>,
    %c1_38 = arith.constant 1 : index
    %c0_39 = arith.constant 0 : index
    %c0_40 = arith.constant 0 : index
    %45 = vector.load %arg4[%c1_38, %c0_39, %c0_40] : memref<2x16x80xf32, #tpu.memory_space<vmem>>, vector<1x16x64xf32>
    %46 = vector.shape_cast %45 : vector<1x16x64xf32> to vector<16x64xf32>
    %c1_41 = arith.constant 1 : index
    %c0_42 = arith.constant 0 : index
    %c4_43 = arith.constant 4 : index
    %47 = vector.load %arg4[%c1_41, %c0_42, %c4_43] : memref<2x16x80xf32, #tpu.memory_space<vmem>>, vector<1x16x64xf32>
    %48 = vector.shape_cast %47 : vector<1x16x64xf32> to vector<16x64xf32>
    %49 = arith.maximumf %46, %48 : vector<16x64xf32>
    %c1_44 = arith.constant 1 : index
    %c0_45 = arith.constant 0 : index
    %c8_46 = arith.constant 8 : index
    %50 = vector.load %arg4[%c1_44, %c0_45, %c8_46] : memref<2x16x80xf32, #tpu.memory_space<vmem>>, vector<1x16x64xf32>
    %51 = vector.shape_cast %50 : vector<1x16x64xf32> to vector<16x64xf32>
    %52 = arith.maximumf %49, %51 : vector<16x64xf32>
    %c1_47 = arith.constant 1 : index
    %c0_48 = arith.constant 0 : index
    %c12_49 = arith.constant 12 : index
    %53 = vector.load %arg4[%c1_47, %c0_48, %c12_49] : memref<2x16x80xf32, #tpu.memory_space<vmem>>, vector<1x16x64xf32>
    %54 = vector.shape_cast %53 : vector<1x16x64xf32> to vector<16x64xf32>
    %55 = arith.maximumf %52, %54 : vector<16x64xf32>
    %c1_50 = arith.constant 1 : index
    %c0_51 = arith.constant 0 : index
    %c16_52 = arith.constant 16 : index
    %56 = vector.load %arg4[%c1_50, %c0_51, %c16_52] : memref<2x16x80xf32, #tpu.memory_space<vmem>>, vector<1x16x64xf32>
    %57 = vector.shape_cast %56 : vector<1x16x64xf32> to vector<16x64xf32>
    %58 = arith.maximumf %55, %57 : vector<16x64xf32>
    %c2_53 = arith.constant 2 : index
    %c64 = arith.constant 64 : index
    %59 = vector.load %arg5[%c2_53, %c64] : memref<20x128xf32, #tpu.memory_space<vmem>>, vector<16x64xf32>
    tpu.vector_store %arg5[%c2_53, %c64], %58 {strides = array<i32>} : memref<20x128xf32, #tpu.memory_space<vmem>>, vector<16x64xf32>,
    %c0_54 = arith.constant 0 : index
    %c0_55 = arith.constant 0 : index
    %60 = vector.load %arg5[%c0_54, %c0_55] : memref<20x128xf32, #tpu.memory_space<vmem>>, vector<16x128xf32>
    %c1_56 = arith.constant 1 : index
    %c0_57 = arith.constant 0 : index
    %61 = vector.load %arg5[%c1_56, %c0_57] : memref<20x128xf32, #tpu.memory_space<vmem>>, vector<16x128xf32>
    %62 = arith.maximumf %60, %61 : vector<16x128xf32>
    %c2_58 = arith.constant 2 : index
    %c0_59 = arith.constant 0 : index
    %63 = vector.load %arg5[%c2_58, %c0_59] : memref<20x128xf32, #tpu.memory_space<vmem>>, vector<16x128xf32>
    %64 = arith.maximumf %62, %63 : vector<16x128xf32>
    %c3 = arith.constant 3 : index
    %c0_60 = arith.constant 0 : index
    %65 = vector.load %arg5[%c3, %c0_60] : memref<20x128xf32, #tpu.memory_space<vmem>>, vector<16x128xf32>
    %66 = arith.maximumf %64, %65 : vector<16x128xf32>
    %c4_61 = arith.constant 4 : index
    %c0_62 = arith.constant 0 : index
    %67 = vector.load %arg5[%c4_61, %c0_62] : memref<20x128xf32, #tpu.memory_space<vmem>>, vector<16x128xf32>
    %68 = arith.maximumf %66, %67 : vector<16x128xf32>
    %c0_63 = arith.constant 0 : index
    %c0_64 = arith.constant 0 : index
    %c0_65 = arith.constant 0 : index
    %69 = vector.load %arg1[%c0_63, %c0_64, %c0_65] : memref<2x128x128xf32, #tpu.memory_space<vmem>>, vector<1x128x128xf32>
    %70 = vector.shape_cast %69 : vector<1x128x128xf32> to vector<128x128xf32>
    %cst_66 = arith.constant dense<0.000000e+00> : vector<16x128xf32>
    %71 = tpu.matmul %68, %70, %cst_66 {dimension_numbers = #tpu.dot_dimension_numbers<[1], [0], [0], [1], [0, 0, 1, 1], [], []>} : vector<16x128xf32>, vector<128x128xf32>, vector<16x128xf32> -> vector<16x128xf32>
    %72 = arith.addf %21, %71 : vector<16x128xf32>
    %73 = vector.extract_strided_slice %71 {offsets = [0, 0], sizes = [16, 64], strides = [1, 1]} : vector<16x128xf32> to vector<16x64xf32>
    %c0_67 = arith.constant 0 : index
    %c0_68 = arith.constant 0 : index
    %c8_69 = arith.constant 8 : index
    %74 = vector.load %arg4[%c0_67, %c0_68, %c8_69] : memref<2x16x80xf32, #tpu.memory_space<vmem>>, vector<1x16x64xf32>
    %75 = vector.shape_cast %74 : vector<1x16x64xf32> to vector<16x64xf32>
    %76 = vector.shape_cast %73 : vector<16x64xf32> to vector<1x16x64xf32>
    tpu.vector_store %arg4[%c0_67, %c0_68, %c8_69], %76 {strides = array<i32>} : memref<2x16x80xf32, #tpu.memory_space<vmem>>, vector<1x16x64xf32>,
    %77 = vector.extract_strided_slice %71 {offsets = [0, 64], sizes = [16, 64], strides = [1, 1]} : vector<16x128xf32> to vector<16x64xf32>
    %c1_70 = arith.constant 1 : index
    %c0_71 = arith.constant 0 : index
    %c8_72 = arith.constant 8 : index
    %78 = vector.load %arg4[%c1_70, %c0_71, %c8_72] : memref<2x16x80xf32, #tpu.memory_space<vmem>>, vector<1x16x64xf32>
    %79 = vector.shape_cast %78 : vector<1x16x64xf32> to vector<16x64xf32>
    %80 = vector.shape_cast %77 : vector<16x64xf32> to vector<1x16x64xf32>
    tpu.vector_store %arg4[%c1_70, %c0_71, %c8_72], %80 {strides = array<i32>} : memref<2x16x80xf32, #tpu.memory_space<vmem>>, vector<1x16x64xf32>,
    %c0_73 = arith.constant 0 : index
    %c0_74 = arith.constant 0 : index
    %c0_75 = arith.constant 0 : index
    %81 = vector.load %arg4[%c0_73, %c0_74, %c0_75] : memref<2x16x80xf32, #tpu.memory_space<vmem>>, vector<1x16x64xf32>
    %82 = vector.shape_cast %81 : vector<1x16x64xf32> to vector<16x64xf32>
    %c0_76 = arith.constant 0 : index
    %c0_77 = arith.constant 0 : index
    %c4_78 = arith.constant 4 : index
    %83 = vector.load %arg4[%c0_76, %c0_77, %c4_78] : memref<2x16x80xf32, #tpu.memory_space<vmem>>, vector<1x16x64xf32>
    %84 = vector.shape_cast %83 : vector<1x16x64xf32> to vector<16x64xf32>
    %85 = arith.maximumf %82, %84 : vector<16x64xf32>
    %c0_79 = arith.constant 0 : index
    %c0_80 = arith.constant 0 : index
    %c8_81 = arith.constant 8 : index
    %86 = vector.load %arg4[%c0_79, %c0_80, %c8_81] : memref<2x16x80xf32, #tpu.memory_space<vmem>>, vector<1x16x64xf32>
    %87 = vector.shape_cast %86 : vector<1x16x64xf32> to vector<16x64xf32>
    %88 = arith.maximumf %85, %87 : vector<16x64xf32>
    %c0_82 = arith.constant 0 : index
    %c0_83 = arith.constant 0 : index
    %c12_84 = arith.constant 12 : index
    %89 = vector.load %arg4[%c0_82, %c0_83, %c12_84] : memref<2x16x80xf32, #tpu.memory_space<vmem>>, vector<1x16x64xf32>
    %90 = vector.shape_cast %89 : vector<1x16x64xf32> to vector<16x64xf32>
    %91 = arith.maximumf %88, %90 : vector<16x64xf32>
    %c0_85 = arith.constant 0 : index
    %c0_86 = arith.constant 0 : index
    %c16_87 = arith.constant 16 : index
    %92 = vector.load %arg4[%c0_85, %c0_86, %c16_87] : memref<2x16x80xf32, #tpu.memory_space<vmem>>, vector<1x16x64xf32>
    %93 = vector.shape_cast %92 : vector<1x16x64xf32> to vector<16x64xf32>
    %94 = arith.maximumf %91, %93 : vector<16x64xf32>
    %c2_88 = arith.constant 2 : index
    %c0_89 = arith.constant 0 : index
    %95 = vector.load %arg5[%c2_88, %c0_89] : memref<20x128xf32, #tpu.memory_space<vmem>>, vector<16x64xf32>
    tpu.vector_store %arg5[%c2_88, %c0_89], %94 {strides = array<i32>} : memref<20x128xf32, #tpu.memory_space<vmem>>, vector<16x64xf32>,
    %c1_90 = arith.constant 1 : index
    %c0_91 = arith.constant 0 : index
    %c0_92 = arith.constant 0 : index
    %96 = vector.load %arg4[%c1_90, %c0_91, %c0_92] : memref<2x16x80xf32, #tpu.memory_space<vmem>>, vector<1x16x64xf32>
    %97 = vector.shape_cast %96 : vector<1x16x64xf32> to vector<16x64xf32>
    %c1_93 = arith.constant 1 : index
    %c0_94 = arith.constant 0 : index
    %c4_95 = arith.constant 4 : index
    %98 = vector.load %arg4[%c1_93, %c0_94, %c4_95] : memref<2x16x80xf32, #tpu.memory_space<vmem>>, vector<1x16x64xf32>
    %99 = vector.shape_cast %98 : vector<1x16x64xf32> to vector<16x64xf32>
    %100 = arith.maximumf %97, %99 : vector<16x64xf32>
    %c1_96 = arith.constant 1 : index
    %c0_97 = arith.constant 0 : index
    %c8_98 = arith.constant 8 : index
    %101 = vector.load %arg4[%c1_96, %c0_97, %c8_98] : memref<2x16x80xf32, #tpu.memory_space<vmem>>, vector<1x16x64xf32>
    %102 = vector.shape_cast %101 : vector<1x16x64xf32> to vector<16x64xf32>
    %103 = arith.maximumf %100, %102 : vector<16x64xf32>
    %c1_99 = arith.constant 1 : index
    %c0_100 = arith.constant 0 : index
    %c12_101 = arith.constant 12 : index
    %104 = vector.load %arg4[%c1_99, %c0_100, %c12_101] : memref<2x16x80xf32, #tpu.memory_space<vmem>>, vector<1x16x64xf32>
    %105 = vector.shape_cast %104 : vector<1x16x64xf32> to vector<16x64xf32>
    %106 = arith.maximumf %103, %105 : vector<16x64xf32>
    %c1_102 = arith.constant 1 : index
    %c0_103 = arith.constant 0 : index
    %c16_104 = arith.constant 16 : index
    %107 = vector.load %arg4[%c1_102, %c0_103, %c16_104] : memref<2x16x80xf32, #tpu.memory_space<vmem>>, vector<1x16x64xf32>
    %108 = vector.shape_cast %107 : vector<1x16x64xf32> to vector<16x64xf32>
    %109 = arith.maximumf %106, %108 : vector<16x64xf32>
    %c2_105 = arith.constant 2 : index
    %c64_106 = arith.constant 64 : index
    %110 = vector.load %arg5[%c2_105, %c64_106] : memref<20x128xf32, #tpu.memory_space<vmem>>, vector<16x64xf32>
    tpu.vector_store %arg5[%c2_105, %c64_106], %109 {strides = array<i32>} : memref<20x128xf32, #tpu.memory_space<vmem>>, vector<16x64xf32>,
    %c0_107 = arith.constant 0 : index
    %c0_108 = arith.constant 0 : index
    %111 = vector.load %arg5[%c0_107, %c0_108] : memref<20x128xf32, #tpu.memory_space<vmem>>, vector<16x128xf32>
    %c1_109 = arith.constant 1 : index
    %c0_110 = arith.constant 0 : index
    %112 = vector.load %arg5[%c1_109, %c0_110] : memref<20x128xf32, #tpu.memory_space<vmem>>, vector<16x128xf32>
    %113 = arith.maximumf %111, %112 : vector<16x128xf32>
    %c2_111 = arith.constant 2 : index
    %c0_112 = arith.constant 0 : index
    %114 = vector.load %arg5[%c2_111, %c0_112] : memref<20x128xf32, #tpu.memory_space<vmem>>, vector<16x128xf32>
    %115 = arith.maximumf %113, %114 : vector<16x128xf32>
    %c3_113 = arith.constant 3 : index
    %c0_114 = arith.constant 0 : index
    %116 = vector.load %arg5[%c3_113, %c0_114] : memref<20x128xf32, #tpu.memory_space<vmem>>, vector<16x128xf32>
    %117 = arith.maximumf %115, %116 : vector<16x128xf32>
    %c4_115 = arith.constant 4 : index
    %c0_116 = arith.constant 0 : index
    %118 = vector.load %arg5[%c4_115, %c0_116] : memref<20x128xf32, #tpu.memory_space<vmem>>, vector<16x128xf32>
    %119 = arith.maximumf %117, %118 : vector<16x128xf32>
    %c1_117 = arith.constant 1 : index
    %c0_118 = arith.constant 0 : index
    %c0_119 = arith.constant 0 : index
    %120 = vector.load %arg1[%c1_117, %c0_118, %c0_119] : memref<2x128x128xf32, #tpu.memory_space<vmem>>, vector<1x128x128xf32>
    %121 = vector.shape_cast %120 : vector<1x128x128xf32> to vector<128x128xf32>
    %cst_120 = arith.constant dense<0.000000e+00> : vector<16x128xf32>
    %122 = tpu.matmul %119, %121, %cst_120 {dimension_numbers = #tpu.dot_dimension_numbers<[1], [0], [0], [1], [0, 0, 1, 1], [], []>} : vector<16x128xf32>, vector<128x128xf32>, vector<16x128xf32> -> vector<16x128xf32>
    %123 = arith.addf %72, %122 : vector<16x128xf32>
    %c0_121 = arith.constant 0 : index
    %c0_122 = arith.constant 0 : index
    %c0_123 = arith.constant 0 : index
    %124 = vector.load %arg3[%c0_121, %c0_122, %c0_123] : memref<1x16x128xf32, #tpu.memory_space<vmem>>, vector<1x16x128xf32>
    %125 = vector.shape_cast %124 : vector<1x16x128xf32> to vector<16x128xf32>
    %126 = vector.shape_cast %123 : vector<16x128xf32> to vector<1x16x128xf32>
    tpu.vector_store %arg3[%c0_121, %c0_122, %c0_123], %126 {strides = array<i32>} : memref<1x16x128xf32, #tpu.memory_space<vmem>>, vector<1x16x128xf32>,
    return
  }
  func.func @transform_0(%arg0: i32) -> (i32, i32, i32) {
    %c0_i32 = arith.constant 0 : i32
    %c0_i32_0 = arith.constant 0 : i32
    %c0_i32_1 = arith.constant 0 : i32
    %c0_i32_2 = arith.constant 0 : i32
    return %c0_i32, %c0_i32_0, %c0_i32_1 : i32, i32, i32
  }
  func.func @transform_1(%arg0: i32) -> (i32, i32, i32) {
    %c0_i32 = arith.constant 0 : i32
    %c0_i32_0 = arith.constant 0 : i32
    %c0_i32_1 = arith.constant 0 : i32
    return %arg0, %c0_i32, %c0_i32_0 : i32, i32, i32
  }
  func.func @transform_2(%arg0: i32) -> (i32, i32, i32) {
    %c0_i32 = arith.constant 0 : i32
    %c0_i32_0 = arith.constant 0 : i32
    %c0_i32_1 = arith.constant 0 : i32
    return %arg0, %c0_i32, %c0_i32_0 : i32, i32, i32
  }
}

</mosaic_0001>

<llo_original>
// kernel: crp_block.1
$region0: #{crp_block.1}
  #allocation0 [shape = 'u32[]', space=smem, size = 0x4, offset = 0x4, fixed_abs, tag = 'smem constant byte address 0x4 - core index']
  #allocation1 [shape = 'u32[144,128]{1,0:T(1,128)}', space=vmem, size = 0x12000, scoped, tag = 'internal scratch']
  #allocation2 [shape = 'f32[2,16,80]{2,1,0:T(8,128)}', space=vmem, size = 0x4000, scoped, tag = 'scratch operand']
  #allocation3 [shape = 'f32[20,128]{1,0:T(8,128)}', space=vmem, size = 0x3000, scoped, tag = 'scratch operand']
  %s0 = inlined_call_operand.vmem [shape: f32[2,128,128], index: 0, kind: input, shape index: {}]
  %s1 = inlined_call_operand.vmem [shape: f32[1,16,128], index: 1, kind: input, shape index: {}, may-alias: {1,2}]
  %s2 = inlined_call_operand.vmem [shape: f32[1,16,128], index: 2, kind: output, shape index: {}, may-alias: {1,2}]
  %s3 = sld [smem:[#allocation0]]
  $region18: #{crp_block.1} parent=0
    _
  %s5 = ssub.s32 1, %s3
  %s6 = scalar_select 0, %s5, %s3
  // Predicated region
  $region2: #{crp_block.1} parent=0 // pred_check
    _
  $region3: #{crp_block.1} parent=0 // pred_check_branch
    %8 = sbr.rel (0) target = $region5
  $region4: #{crp_block.1} parent=0 // pred_region
    _
  $region5: #{crp_block.1} parent=0 // pred_fallthru
    _
  // Predicated region
  $region6: #{crp_block.1} parent=0 // pred_check
    _
  $region7: #{crp_block.1} parent=0 // pred_check_branch
    %10 = sbr.rel (0) target = $region9
  $region8: #{crp_block.1} parent=0 // pred_region
    _
  $region9: #{crp_block.1} parent=0 // pred_fallthru
    _
  %vm11 = vcmask 64512
  %12 = vst.msk [vmem:[#allocation2] sm:$0xff] %vm11, -inf
  %13 = vst.msk [vmem:[#allocation2 + $0x8] sm:$0xff] %vm11, -inf
  %vm14 = vcmask 654912
  %15 = vst.msk [vmem:[#allocation2] sm:$0xff] %vm14, -inf
  %16 = vst.msk [vmem:[#allocation2 + $0x8] sm:$0xff] %vm14, -inf
  %s17 = scalar_lea.vmem [#allocation2], 16
  %18 = vst.msk [vmem:[%s17] sm:$0xff] %vm11, -inf
  %19 = vst.msk [vmem:[%s17 + $0x8] sm:$0xff] %vm11, -inf
  %20 = vst.msk [vmem:[%s17] sm:$0xff] %vm14, -inf
  %21 = vst.msk [vmem:[%s17 + $0x8] sm:$0xff] %vm14, -inf
  %22 = vst [vmem:[#allocation3] sm:$0x3] -inf
  %23 = vst [vmem:[#allocation3 + $0x12] sm:$0x3] -inf
  %v24 = vld [vmem:[%s1] sm:$0xff]
  %v25 = vld [vmem:[%s1 + $0x8] sm:$0xff]
  %28 = vrot.lane.b32.xlu0 %v24, 8
  %v29 = vpop.permute.xlu0 %28
  %30 = vrot.lane.b32.xlu0 %v25, 8
  %v31 = vpop.permute.xlu0 %30
  %vm34 = vcmask 588864
  %35 = vst.msk [vmem:[#allocation2] sm:$0xff] %vm34, %v29
  %36 = vst.msk [vmem:[#allocation2 + $0x8] sm:$0xff] %vm34, %v31
  %37 = vrot.lane.b32.xlu0 %v24, 72
  %v38 = vpop.permute.xlu0 %37
  %39 = vrot.lane.b32.xlu0 %v25, 72
  %v40 = vpop.permute.xlu0 %39
  %43 = vst.msk [vmem:[%s17] sm:$0xff] %vm34, %v38
  %44 = vst.msk [vmem:[%s17 + $0x8] sm:$0xff] %vm34, %v40
  %v45 = vld [vmem:[#allocation2] sm:$0xff]
  %v46 = vld [vmem:[#allocation2 + $0x8] sm:$0xff]
  %49 = vrot.lane.b32.xlu0 %v45, 124
  %v50 = vpop.permute.xlu0 %49
  %51 = vrot.lane.b32.xlu0 %v46, 124
  %v52 = vpop.permute.xlu0 %51
  %v55 = vmax.f32 %v45, %v50
  %v56 = vmax.f32 %v46, %v52
  %57 = vrot.lane.b32.xlu0 %v45, 120
  %v58 = vpop.permute.xlu0 %57
  %59 = vrot.lane.b32.xlu0 %v46, 120
  %v60 = vpop.permute.xlu0 %59
  %v63 = vmax.f32 %v55, %v58
  %v64 = vmax.f32 %v56, %v60
  %65 = vrot.lane.b32.xlu0 %v45, 116
  %v66 = vpop.permute.xlu0 %65
  %67 = vrot.lane.b32.xlu0 %v46, 116
  %v68 = vpop.permute.xlu0 %67
  %v71 = vmax.f32 %v63, %v66
  %v72 = vmax.f32 %v64, %v68
  %73 = vrot.lane.b32.xlu0 %v45, 112
  %v74 = vpop.permute.xlu0 %73
  %75 = vrot.lane.b32.xlu0 %v46, 112
  %v76 = vpop.permute.xlu0 %75
  %v79 = vmax.f32 %v71, %v74
  %v80 = vmax.f32 %v72, %v76
  %vm81 = vcmask 523264
  %82 = vst.msk [vmem:[#allocation3 + $0x2] sm:$0xff] %vm81, %v79
  %83 = vst.msk [vmem:[#allocation3 + $0xa] sm:$0xff] %vm81, %v80
  %v84 = vld [vmem:[%s17] sm:$0xff]
  %v85 = vld [vmem:[%s17 + $0x8] sm:$0xff]
  %88 = vrot.lane.b32.xlu0 %v84, 124
  %v89 = vpop.permute.xlu0 %88
  %90 = vrot.lane.b32.xlu0 %v85, 124
  %v91 = vpop.permute.xlu0 %90
  %v94 = vmax.f32 %v84, %v89
  %v95 = vmax.f32 %v85, %v91
  %96 = vrot.lane.b32.xlu0 %v84, 120
  %v97 = vpop.permute.xlu0 %96
  %98 = vrot.lane.b32.xlu0 %v85, 120
  %v99 = vpop.permute.xlu0 %98
  %v102 = vmax.f32 %v94, %v97
  %v103 = vmax.f32 %v95, %v99
  %104 = vrot.lane.b32.xlu0 %v84, 116
  %v105 = vpop.permute.xlu0 %104
  %106 = vrot.lane.b32.xlu0 %v85, 116
  %v107 = vpop.permute.xlu0 %106
  %v110 = vmax.f32 %v102, %v105
  %v111 = vmax.f32 %v103, %v107
  %112 = vrot.lane.b32.xlu0 %v84, 112
  %v113 = vpop.permute.xlu0 %112
  %114 = vrot.lane.b32.xlu0 %v85, 112
  %v115 = vpop.permute.xlu0 %114
  %v118 = vmax.f32 %v110, %v113
  %v119 = vmax.f32 %v111, %v115
  %122 = vrot.lane.b32.xlu0 %v118, 64
  %v123 = vpop.permute.xlu0 %122
  %124 = vrot.lane.b32.xlu0 %v119, 64
  %v125 = vpop.permute.xlu0 %124
  %vm128 = vcmask 1048064
  %129 = vst.msk [vmem:[#allocation3 + $0x2] sm:$0xff] %vm128, %v123
  %130 = vst.msk [vmem:[#allocation3 + $0xa] sm:$0xff] %vm128, %v125
  %v131 = vld [vmem:[#allocation3] sm:$0xff]
  %v132 = vld [vmem:[#allocation3 + $0x8] sm:$0xff]
  %v133 = vld [vmem:[#allocation3 + $0x1] sm:$0xff]
  %v134 = vld [vmem:[#allocation3 + $0x9] sm:$0xff]
  %v135 = vmax.f32 %v131, %v133
  %v136 = vmax.f32 %v132, %v134
  %v137 = vld [vmem:[#allocation3 + $0x2] sm:$0xff]
  %v138 = vld [vmem:[#allocation3 + $0xa] sm:$0xff]
  %v139 = vmax.f32 %v135, %v137
  %v140 = vmax.f32 %v136, %v138
  %v141 = vld [vmem:[#allocation3 + $0x3] sm:$0xff]
  %v142 = vld [vmem:[#allocation3 + $0xb] sm:$0xff]
  %v143 = vmax.f32 %v139, %v141
  %v144 = vmax.f32 %v140, %v142
  %v145 = vld [vmem:[#allocation3 + $0x4] sm:$0xff]
  %v146 = vld [vmem:[#allocation3 + $0xc] sm:$0xff]
  %v147 = vmax.f32 %v143, %v145
  %v148 = vmax.f32 %v144, %v146
  %v149 = vld [vmem:[%s0] sm:$0xff]
  %v150 = vld [vmem:[%s0 + $0x8] sm:$0xff]
  %v151 = vld [vmem:[%s0 + $0x10] sm:$0xff]
  %v152 = vld [vmem:[%s0 + $0x18] sm:$0xff]
  %v153 = vld [vmem:[%s0 + $0x20] sm:$0xff]
  %v154 = vld [vmem:[%s0 + $0x28] sm:$0xff]
  %v155 = vld [vmem:[%s0 + $0x30] sm:$0xff]
  %v156 = vld [vmem:[%s0 + $0x38] sm:$0xff]
  %v157 = vld [vmem:[%s0 + $0x40] sm:$0xff]
  %v158 = vld [vmem:[%s0 + $0x48] sm:$0xff]
  %v159 = vld [vmem:[%s0 + $0x50] sm:$0xff]
  %v160 = vld [vmem:[%s0 + $0x58] sm:$0xff]
  %v161 = vld [vmem:[%s0 + $0x60] sm:$0xff]
  %v162 = vld [vmem:[%s0 + $0x68] sm:$0xff]
  %v163 = vld [vmem:[%s0 + $0x70] sm:$0xff]
  %v164 = vld [vmem:[%s0 + $0x78] sm:$0xff]
  %165 = vmatprep.subr.mxu0 0.0
  %166 = vmatpush1.msra.mxu0 %v164
  %167 = vmatprep.subr.mxu0 0.0
  %168 = vmatpush1.msra.mxu0 %v163
  %169 = vmatprep.subr.mxu0 0.0
  %170 = vmatpush1.msra.mxu0 %v162
  %171 = vmatprep.subr.mxu0 0.0
  %172 = vmatpush1.msra.mxu0 %v161
  %173 = vmatprep.subr.mxu0 0.0
  %174 = vmatpush1.msra.mxu0 %v160
  %175 = vmatprep.subr.mxu0 0.0
  %176 = vmatpush1.msra.mxu0 %v159
  %177 = vmatprep.subr.mxu0 0.0
  %178 = vmatpush1.msra.mxu0 %v158
  %179 = vmatprep.subr.mxu0 0.0
  %180 = vmatpush1.msra.mxu0 %v157
  %181 = vmatprep.subr.mxu0 0.0
  %182 = vmatpush1.msra.mxu0 %v156
  %183 = vmatprep.subr.mxu0 0.0
  %184 = vmatpush1.msra.mxu0 %v155
  %185 = vmatprep.subr.mxu0 0.0
  %186 = vmatpush1.msra.mxu0 %v154
  %187 = vmatprep.subr.mxu0 0.0
  %188 = vmatpush1.msra.mxu0 %v153
  %189 = vmatprep.subr.mxu0 0.0
  %190 = vmatpush1.msra.mxu0 %v152
  %191 = vmatprep.subr.mxu0 0.0
  %192 = vmatpush1.msra.mxu0 %v151
  %193 = vmatprep.subr.mxu0 0.0
  %194 = vmatpush1.msra.mxu0 %v150
  %195 = vmatprep.subr.mxu0 0.0
  %196 = vmatpush1.msra.mxu0 %v149
  %197 = vmatprep.subr.mxu0 0.0
  %198 = vmatpush2.msra.mxu0 0.0
  %199 = vmatprep.subr.mxu0 0.0
  %200 = vmatpush2.msra.mxu0 0.0
  %201 = vmatprep.subr.mxu0 0.0
  %202 = vmatpush2.msra.mxu0 0.0
  %203 = vmatprep.subr.mxu0 0.0
  %204 = vmatpush2.msra.mxu0 0.0
  %205 = vmatprep.subr.mxu0 0.0
  %206 = vmatpush2.msra.mxu0 0.0
  %207 = vmatprep.subr.mxu0 0.0
  %208 = vmatpush2.msra.mxu0 0.0
  %209 = vmatprep.subr.mxu0 0.0
  %210 = vmatpush2.msra.mxu0 0.0
  %211 = vmatprep.subr.mxu0 0.0
  %212 = vmatpush2.msra.mxu0 0.0
  %213 = vmatprep.subr.mxu0 0.0
  %214 = vmatpush2.msra.mxu0 0.0
  %215 = vmatprep.subr.mxu0 0.0
  %216 = vmatpush2.msra.mxu0 0.0
  %217 = vmatprep.subr.mxu0 0.0
  %218 = vmatpush2.msra.mxu0 0.0
  %219 = vmatprep.subr.mxu0 0.0
  %220 = vmatpush2.msra.mxu0 0.0
  %221 = vmatprep.subr.mxu0 0.0
  %222 = vmatpush2.msra.mxu0 0.0
  %223 = vmatprep.subr.mxu0 0.0
  %224 = vmatpush2.msra.mxu0 0.0
  %225 = vmatprep.subr.mxu0 0.0
  %226 = vmatpush2.msra.mxu0 0.0
  %227 = vmatprep.subr.mxu0 0.0
  %228 = vmatpush2.msra.mxu0 0.0
  %229 = vmatprep.mubr.f32.mxu0 0.0
  %230 = vmatmul.mubr.f32.gmra.mxu0 %v147
  %v231 = vpop.f32.mrf.mxu0
  %v232 = vadd.f32 0.0, %v231
  %v233 = vpop.f32.mrf.mxu0
  %234 = vmatprep.mubr.f32.mxu0 0.0
  %235 = vmatmul.mubr.f32.gmra.mxu0 %v148
  %v236 = vpop.f32.mrf.mxu0
  %v237 = vadd.f32 0.0, %v236
  %v238 = vpop.f32.mrf.mxu0
  %239 = vdwg.mxu0
  %v240 = vadd.f32 %v24, %v232
  %v241 = vadd.f32 %v25, %v237
  %244 = vrot.lane.b32.xlu0 %v232, 8
  %v245 = vpop.permute.xlu0 %244
  %246 = vrot.lane.b32.xlu0 %v237, 8
  %v247 = vpop.permute.xlu0 %246
  %250 = vst.msk [vmem:[#allocation2] sm:$0xff] %vm34, %v245
  %251 = vst.msk [vmem:[#allocation2 + $0x8] sm:$0xff] %vm34, %v247
  %252 = vrot.lane.b32.xlu0 %v232, 72
  %v253 = vpop.permute.xlu0 %252
  %254 = vrot.lane.b32.xlu0 %v237, 72
  %v255 = vpop.permute.xlu0 %254
  %258 = vst.msk [vmem:[%s17] sm:$0xff] %vm34, %v253
  %259 = vst.msk [vmem:[%s17 + $0x8] sm:$0xff] %vm34, %v255
  %v260 = vld [vmem:[#allocation2] sm:$0xff]
  %v261 = vld [vmem:[#allocation2 + $0x8] sm:$0xff]
  %264 = vrot.lane.b32.xlu0 %v260, 124
  %v265 = vpop.permute.xlu0 %264
  %266 = vrot.lane.b32.xlu0 %v261, 124
  %v267 = vpop.permute.xlu0 %266
  %v270 = vmax.f32 %v260, %v265
  %v271 = vmax.f32 %v261, %v267
  %272 = vrot.lane.b32.xlu0 %v260, 120
  %v273 = vpop.permute.xlu0 %272
  %274 = vrot.lane.b32.xlu0 %v261, 120
  %v275 = vpop.permute.xlu0 %274
  %v278 = vmax.f32 %v270, %v273
  %v279 = vmax.f32 %v271, %v275
  %280 = vrot.lane.b32.xlu0 %v260, 116
  %v281 = vpop.permute.xlu0 %280
  %282 = vrot.lane.b32.xlu0 %v261, 116
  %v283 = vpop.permute.xlu0 %282
  %v286 = vmax.f32 %v278, %v281
  %v287 = vmax.f32 %v279, %v283
  %288 = vrot.lane.b32.xlu0 %v260, 112
  %v289 = vpop.permute.xlu0 %288
  %290 = vrot.lane.b32.xlu0 %v261, 112
  %v291 = vpop.permute.xlu0 %290
  %v294 = vmax.f32 %v286, %v289
  %v295 = vmax.f32 %v287, %v291
  %296 = vst.msk [vmem:[#allocation3 + $0x2] sm:$0xff] %vm81, %v294
  %297 = vst.msk [vmem:[#allocation3 + $0xa] sm:$0xff] %vm81, %v295
  %v298 = vld [vmem:[%s17] sm:$0xff]
  %v299 = vld [vmem:[%s17 + $0x8] sm:$0xff]
  %302 = vrot.lane.b32.xlu0 %v298, 124
  %v303 = vpop.permute.xlu0 %302
  %304 = vrot.lane.b32.xlu0 %v299, 124
  %v305 = vpop.permute.xlu0 %304
  %v308 = vmax.f32 %v298, %v303
  %v309 = vmax.f32 %v299, %v305
  %310 = vrot.lane.b32.xlu0 %v298, 120
  %v311 = vpop.permute.xlu0 %310
  %312 = vrot.lane.b32.xlu0 %v299, 120
  %v313 = vpop.permute.xlu0 %312
  %v316 = vmax.f32 %v308, %v311
  %v317 = vmax.f32 %v309, %v313
  %318 = vrot.lane.b32.xlu0 %v298, 116
  %v319 = vpop.permute.xlu0 %318
  %320 = vrot.lane.b32.xlu0 %v299, 116
  %v321 = vpop.permute.xlu0 %320
  %v324 = vmax.f32 %v316, %v319
  %v325 = vmax.f32 %v317, %v321
  %326 = vrot.lane.b32.xlu0 %v298, 112
  %v327 = vpop.permute.xlu0 %326
  %328 = vrot.lane.b32.xlu0 %v299, 112
  %v329 = vpop.permute.xlu0 %328
  %v332 = vmax.f32 %v324, %v327
  %v333 = vmax.f32 %v325, %v329
  %336 = vrot.lane.b32.xlu0 %v332, 64
  %v337 = vpop.permute.xlu0 %336
  %338 = vrot.lane.b32.xlu0 %v333, 64
  %v339 = vpop.permute.xlu0 %338
  %342 = vst.msk [vmem:[#allocation3 + $0x2] sm:$0xff] %vm128, %v337
  %343 = vst.msk [vmem:[#allocation3 + $0xa] sm:$0xff] %vm128, %v339
  %v344 = vld [vmem:[#allocation3] sm:$0xff]
  %v345 = vld [vmem:[#allocation3 + $0x8] sm:$0xff]
  %v346 = vld [vmem:[#allocation3 + $0x1] sm:$0xff]
  %v347 = vld [vmem:[#allocation3 + $0x9] sm:$0xff]
  %v348 = vmax.f32 %v344, %v346
  %v349 = vmax.f32 %v345, %v347
  %v350 = vld [vmem:[#allocation3 + $0x2] sm:$0xff]
  %v351 = vld [vmem:[#allocation3 + $0xa] sm:$0xff]
  %v352 = vmax.f32 %v348, %v350
  %v353 = vmax.f32 %v349, %v351
  %v354 = vld [vmem:[#allocation3 + $0x3] sm:$0xff]
  %v355 = vld [vmem:[#allocation3 + $0xb] sm:$0xff]
  %v356 = vmax.f32 %v352, %v354
  %v357 = vmax.f32 %v353, %v355
  %v358 = vld [vmem:[#allocation3 + $0x4] sm:$0xff]
  %v359 = vld [vmem:[#allocation3 + $0xc] sm:$0xff]
  %v360 = vmax.f32 %v356, %v358
  %v361 = vmax.f32 %v357, %v359
  %s362 = scalar_lea.vmem %s0, 128
  %v363 = vld [vmem:[%s362] sm:$0xff]
  %v364 = vld [vmem:[%s362 + $0x8] sm:$0xff]
  %v365 = vld [vmem:[%s362 + $0x10] sm:$0xff]
  %v366 = vld [vmem:[%s362 + $0x18] sm:$0xff]
  %v367 = vld [vmem:[%s362 + $0x20] sm:$0xff]
  %v368 = vld [vmem:[%s362 + $0x28] sm:$0xff]
  %v369 = vld [vmem:[%s362 + $0x30] sm:$0xff]
  %v370 = vld [vmem:[%s362 + $0x38] sm:$0xff]
  %v371 = vld [vmem:[%s362 + $0x40] sm:$0xff]
  %v372 = vld [vmem:[%s362 + $0x48] sm:$0xff]
  %v373 = vld [vmem:[%s362 + $0x50] sm:$0xff]
  %v374 = vld [vmem:[%s362 + $0x58] sm:$0xff]
  %v375 = vld [vmem:[%s362 + $0x60] sm:$0xff]
  %v376 = vld [vmem:[%s362 + $0x68] sm:$0xff]
  %v377 = vld [vmem:[%s362 + $0x70] sm:$0xff]
  %v378 = vld [vmem:[%s362 + $0x78] sm:$0xff]
  %379 = vmatprep.subr.mxu0 0.0
  %380 = vmatpush1.msra.mxu0 %v378
  %381 = vmatprep.subr.mxu0 0.0
  %382 = vmatpush1.msra.mxu0 %v377
  %383 = vmatprep.subr.mxu0 0.0
  %384 = vmatpush1.msra.mxu0 %v376
  %385 = vmatprep.subr.mxu0 0.0
  %386 = vmatpush1.msra.mxu0 %v375
  %387 = vmatprep.subr.mxu0 0.0
  %388 = vmatpush1.msra.mxu0 %v374
  %389 = vmatprep.subr.mxu0 0.0
  %390 = vmatpush1.msra.mxu0 %v373
  %391 = vmatprep.subr.mxu0 0.0
  %392 = vmatpush1.msra.mxu0 %v372
  %393 = vmatprep.subr.mxu0 0.0
  %394 = vmatpush1.msra.mxu0 %v371
  %395 = vmatprep.subr.mxu0 0.0
  %396 = vmatpush1.msra.mxu0 %v370
  %397 = vmatprep.subr.mxu0 0.0
  %398 = vmatpush1.msra.mxu0 %v369
  %399 = vmatprep.subr.mxu0 0.0
  %400 = vmatpush1.msra.mxu0 %v368
  %401 = vmatprep.subr.mxu0 0.0
  %402 = vmatpush1.msra.mxu0 %v367
  %403 = vmatprep.subr.mxu0 0.0
  %404 = vmatpush1.msra.mxu0 %v366
  %405 = vmatprep.subr.mxu0 0.0
  %406 = vmatpush1.msra.mxu0 %v365
  %407 = vmatprep.subr.mxu0 0.0
  %408 = vmatpush1.msra.mxu0 %v364
  %409 = vmatprep.subr.mxu0 0.0
  %410 = vmatpush1.msra.mxu0 %v363
  %411 = vmatprep.subr.mxu0 0.0
  %412 = vmatpush2.msra.mxu0 0.0
  %413 = vmatprep.subr.mxu0 0.0
  %414 = vmatpush2.msra.mxu0 0.0
  %415 = vmatprep.subr.mxu0 0.0
  %416 = vmatpush2.msra.mxu0 0.0
  %417 = vmatprep.subr.mxu0 0.0
  %418 = vmatpush2.msra.mxu0 0.0
  %419 = vmatprep.subr.mxu0 0.0
  %420 = vmatpush2.msra.mxu0 0.0
  %421 = vmatprep.subr.mxu0 0.0
  %422 = vmatpush2.msra.mxu0 0.0
  %423 = vmatprep.subr.mxu0 0.0
  %424 = vmatpush2.msra.mxu0 0.0
  %425 = vmatprep.subr.mxu0 0.0
  %426 = vmatpush2.msra.mxu0 0.0
  %427 = vmatprep.subr.mxu0 0.0
  %428 = vmatpush2.msra.mxu0 0.0
  %429 = vmatprep.subr.mxu0 0.0
  %430 = vmatpush2.msra.mxu0 0.0
  %431 = vmatprep.subr.mxu0 0.0
  %432 = vmatpush2.msra.mxu0 0.0
  %433 = vmatprep.subr.mxu0 0.0
  %434 = vmatpush2.msra.mxu0 0.0
  %435 = vmatprep.subr.mxu0 0.0
  %436 = vmatpush2.msra.mxu0 0.0
  %437 = vmatprep.subr.mxu0 0.0
  %438 = vmatpush2.msra.mxu0 0.0
  %439 = vmatprep.subr.mxu0 0.0
  %440 = vmatpush2.msra.mxu0 0.0
  %441 = vmatprep.subr.mxu0 0.0
  %442 = vmatpush2.msra.mxu0 0.0
  %443 = vmatprep.mubr.f32.mxu0 0.0
  %444 = vmatmul.mubr.f32.gmra.mxu0 %v360
  %v445 = vpop.f32.mrf.mxu0
  %v446 = vadd.f32 0.0, %v445
  %v447 = vpop.f32.mrf.mxu0
  %448 = vmatprep.mubr.f32.mxu0 0.0
  %449 = vmatmul.mubr.f32.gmra.mxu0 %v361
  %v450 = vpop.f32.mrf.mxu0
  %v451 = vadd.f32 0.0, %v450
  %v452 = vpop.f32.mrf.mxu0
  %453 = vdwg.mxu0
  %v454 = vadd.f32 %v240, %v446
  %v455 = vadd.f32 %v241, %v451
  %456 = vst [vmem:[%s2] sm:$0xff] %v454
  %457 = vst [vmem:[%s2 + $0x8] sm:$0xff] %v455
  // Predicated region
  $region10: #{crp_block.1} parent=0 // pred_check
    _
  $region11: #{crp_block.1} parent=0 // pred_check_branch
    %459 = sbr.rel (0) target = $region13
  $region12: #{crp_block.1} parent=0 // pred_region
    _
  $region13: #{crp_block.1} parent=0 // pred_fallthru
    _
  // Predicated region
  $region14: #{crp_block.1} parent=0 // pred_check
    _
  $region15: #{crp_block.1} parent=0 // pred_check_branch
    %461 = sbr.rel (0) target = $region17
  $region16: #{crp_block.1} parent=0 // pred_region
    _
  $region17: #{crp_block.1} parent=0 // pred_fallthru
    _

</llo_original>
